<compile_context>
chip_gen: v7x
topology: tpu7x:2x2x1
jax: 0.10.0
libtpu: 0.0.40
codegen_flags: <defaults>
</compile_context>

<pallas_src>
import functools

import jax
import jax.numpy as jnp
from jax.experimental import pallas as pl
from jax.experimental.pallas import tpu as pltpu


# ----------------------------- fused single-pass path ------------------------

def _se_fused_kernel(x_ref, w1_ref, w2_ref, o_ref, *, inv_hw):
    # x_ref: (Bt, C, HW)   w1_ref: (C, hid)   w2_ref: (hid, C)
    x = x_ref[...]
    # Global average pool (AdaptiveAvgPool2d(1)): f32 accumulation folded into
    # the reduce — no full f32 temporary of the slab.
    pooled = jnp.sum(x, axis=-1, dtype=jnp.float32) * inv_hw          # (Bt, C)
    # fc1 (no bias) + ReLU, fc2 (no bias) + Sigmoid, all in f32.
    h = jnp.maximum(
        jnp.dot(pooled, w1_ref[...], preferred_element_type=jnp.float32), 0.0)
    y = jax.nn.sigmoid(
        jnp.dot(h, w2_ref[...], preferred_element_type=jnp.float32))  # (Bt, C)
    # Channel-wise rescale in the input dtype.
    o_ref[...] = x * y.astype(x.dtype)[:, :, None]


# --------------------- HW-split fallback (two pallas_calls) ------------------

def _se_pool_gate_kernel(x_ref, w1_ref, w2_ref, gate_ref, acc_ref,
                         *, inv_hw, hw_total, hw_block):
    # x_ref: (Bt, C, hw_block)  gate_ref: (Bt, C, 1)  acc_ref: (Bt, C) f32
    s = pl.program_id(1)

    @pl.when(s == 0)
    def _():
        acc_ref[...] = jnp.zeros_like(acc_ref)

    x = x_ref[...]
    # Mask the tail block so out-of-bounds lanes never enter the sum.
    lane = jax.lax.broadcasted_iota(jnp.int32, x.shape, 2)
    valid = (s * hw_block + lane) < hw_total
    acc_ref[...] += jnp.sum(jnp.where(valid, x, jnp.zeros_like(x)),
                            axis=-1, dtype=jnp.float32)

    @pl.when(s == pl.num_programs(1) - 1)
    def _():
        pooled = acc_ref[...] * inv_hw                                # (Bt, C)
        h = jnp.maximum(
            jnp.dot(pooled, w1_ref[...], preferred_element_type=jnp.float32),
            0.0)
        y = jax.nn.sigmoid(
            jnp.dot(h, w2_ref[...], preferred_element_type=jnp.float32))
        gate_ref[...] = y.astype(gate_ref.dtype)[:, :, None]


def _se_rescale_kernel(gate_ref, x_ref, o_ref):
    # gate_ref: (Bt, C, 1)  x_ref / o_ref: (Bt, C, hw_block)
    o_ref[...] = x_ref[...] * gate_ref[...]


# ------------------------------ host-side wrapper ----------------------------

def _vmem_capacity_bytes():
    try:
        cap = getattr(pltpu.get_tpu_info(), "vmem_capacity_bytes", None)
        if cap:
            return int(cap)
    except Exception:
        pass
    return 64 << 20  # conservative default: v7x per-TensorCore capacity


def _choose_bt(batch, slab_bytes, vmem_budget):
    """Batch elements per grid step for the fused path (must divide batch)."""
    if batch <= 1:
        return 1
    cap = max(1, vmem_budget // (4 * slab_bytes))   # double-buffered in + out
    cap = min(cap, max(1, batch // 2))              # >= 2 grid steps
    # Target ~8 grid steps, but keep blocks >= ~1 MiB (per-step overhead).
    floor = max(1, -(-(1 << 20) // slab_bytes))
    bt = max(1, min(cap, max(floor, batch // 8)))
    divs = [d for d in range(1, bt + 1) if batch % d == 0]
    mult8 = [d for d in divs if d % 8 == 0]
    return mult8[-1] if mult8 else divs[-1]


def se_layer(x_nchw, w1, w2, *, hw_block=None):
    """SELayer forward.

    x_nchw: (B, C, H, W); w1: (C, C//r); w2: (C//r, C).  Weights are
    pre-transposed so the kernel computes pooled @ w1 and h @ w2 (same math as
    the bias-free nn.Linear pair in the PyTorch module).
    """
    B, C, H, W = x_nchw.shape
    HW = H * W
    x = x_nchw.reshape(B, C, HW)
    dtype_bytes = x.dtype.itemsize
    slab_bytes = C * HW * dtype_bytes               # one batch element
    w_bytes = w1.size * w1.dtype.itemsize + w2.size * w2.dtype.itemsize
    hid = w1.shape[1]
    inv_hw = 1.0 / float(HW)

    # Per-generation VMEM sizing: v7x has only 64 MiB per TensorCore.
    vmem_cap = _vmem_capacity_bytes()
    if vmem_cap <= (64 << 20):
        vmem_budget, vmem_ceiling = 26 << 20, 56 << 20
    else:
        vmem_budget, vmem_ceiling = 48 << 20, 100 << 20

    if hw_block is None and 4 * slab_bytes <= vmem_budget:
        # ------------- fused path: one read + one write of x -----------------
        bt = _choose_bt(B, slab_bytes, vmem_budget)
        block_bytes = bt * slab_bytes
        vmem_limit = int(min(vmem_ceiling,
                             max(16 << 20,
                                 4 * block_bytes + 2 * w_bytes + (2 << 20))))
        cost = pl.CostEstimate(
            flops=2 * B * C * HW + 4 * B * C * hid,
            transcendentals=B * C,
            bytes_accessed=2 * B * C * HW * dtype_bytes + w_bytes,
        )
        out = pl.pallas_call(
            functools.partial(_se_fused_kernel, inv_hw=inv_hw),
            out_shape=jax.ShapeDtypeStruct((B, C, HW), x.dtype),
            grid_spec=pltpu.PrefetchScalarGridSpec(
                num_scalar_prefetch=0,
                grid=(B // bt,),
                in_specs=[
                    pl.BlockSpec((bt, C, HW), lambda b: (b, 0, 0)),
                    pl.BlockSpec(w1.shape, lambda b: (0, 0)),
                    pl.BlockSpec(w2.shape, lambda b: (0, 0)),
                ],
                out_specs=pl.BlockSpec((bt, C, HW), lambda b: (b, 0, 0)),
            ),
            compiler_params=pltpu.CompilerParams(
                dimension_semantics=("parallel",),
                vmem_limit_bytes=vmem_limit,
            ),
            cost_estimate=cost,
        )(x, w1, w2)
        return out.reshape(B, C, H, W)

    # ------------- HW-split fallback: pool+gate pass, then rescale -----------
    if hw_block is None:
        target = max(1 << 20, vmem_budget // 8)
        hw_block = (target // (C * dtype_bytes)) // 128 * 128
    hw_block = int(min(max(128, (hw_block // 128) * 128),
                       ((HW + 127) // 128) * 128))
    n_hw = -(-HW // hw_block)
    bt = 1

    x_block_bytes = bt * C * hw_block * dtype_bytes
    vmem_limit = int(min(vmem_ceiling,
                         max(16 << 20,
                             6 * x_block_bytes + 2 * w_bytes + (4 << 20))))

    gate = pl.pallas_call(
        functools.partial(_se_pool_gate_kernel, inv_hw=inv_hw,
                          hw_total=HW, hw_block=hw_block),
        out_shape=jax.ShapeDtypeStruct((B, C, 1), x.dtype),
        grid_spec=pltpu.PrefetchScalarGridSpec(
            num_scalar_prefetch=0,
            grid=(B // bt, n_hw),
            in_specs=[
                pl.BlockSpec((bt, C, hw_block), lambda b, s: (b, 0, s)),
                pl.BlockSpec(w1.shape, lambda b, s: (0, 0)),
                pl.BlockSpec(w2.shape, lambda b, s: (0, 0)),
            ],
            out_specs=pl.BlockSpec((bt, C, 1), lambda b, s: (b, 0, 0)),
            scratch_shapes=[pltpu.VMEM((bt, C), jnp.float32)],
        ),
        compiler_params=pltpu.CompilerParams(
            dimension_semantics=("parallel", "arbitrary"),
            vmem_limit_bytes=vmem_limit,
        ),
        cost_estimate=pl.CostEstimate(
            flops=B * C * HW + 4 * B * C * hid,
            transcendentals=B * C,
            bytes_accessed=B * C * HW * dtype_bytes + w_bytes,
        ),
    )(x, w1, w2)

    out = pl.pallas_call(
        _se_rescale_kernel,
        out_shape=jax.ShapeDtypeStruct((B, C, HW), x.dtype),
        grid_spec=pltpu.PrefetchScalarGridSpec(
            num_scalar_prefetch=0,
            grid=(B // bt, n_hw),
            in_specs=[
                pl.BlockSpec((bt, C, 1), lambda b, s: (b, 0, 0)),
                pl.BlockSpec((bt, C, hw_block), lambda b, s: (b, 0, s)),
            ],
            out_specs=pl.BlockSpec((bt, C, hw_block), lambda b, s: (b, 0, s)),
        ),
        compiler_params=pltpu.CompilerParams(
            dimension_semantics=("parallel", "parallel"),
            vmem_limit_bytes=vmem_limit,
        ),
        cost_estimate=pl.CostEstimate(
            flops=B * C * HW,
            transcendentals=0,
            bytes_accessed=2 * B * C * HW * dtype_bytes + B * C * dtype_bytes,
        ),
    )(gate, x)

    return out.reshape(B, C, H, W)


def se_layer_ref(x, w1, w2):
    # pure-JAX reference of the PyTorch forward
    pooled = jnp.mean(x, axis=(2, 3))                 # (B, C)
    h = jnp.maximum(pooled @ w1, 0.0)                 # (B, C//r)
    y = jax.nn.sigmoid(h @ w2)                        # (B, C)
    return x * y[:, :, None, None]


if __name__ == "__main__":
    key = jax.random.PRNGKey(0)
    k1, k2, k3, k4, k5, k6 = jax.random.split(key, 6)

    # --- case 1: fused single-pass path (B=4, C=32, 14x14, r=16 -> hid=2) ----
    B, C, H, W = 4, 32, 14, 14
    hid = C // 16
    x = jax.random.normal(k1, (B, C, H, W), dtype=jnp.float32)
    w1 = jax.random.normal(k2, (C, hid), dtype=jnp.float32) * 0.1
    w2 = jax.random.normal(k3, (hid, C), dtype=jnp.float32) * 0.1
    out = se_layer(x, w1, w2)
    jax.block_until_ready(out)
    ref = se_layer_ref(x, w1, w2)
    assert jnp.allclose(out, ref, atol=1e-5, rtol=1e-5), "fused path mismatch"

    # --- case 2: HW-split fallback (forced), including a partial tail block --
    B2, C2, H2, W2 = 2, 32, 20, 20        # HW = 400 -> hw_block=128, tail = 16
    hid2 = C2 // 16
    x2 = jax.random.normal(k4, (B2, C2, H2, W2), dtype=jnp.float32)
    w1b = jax.random.normal(k5, (C2, hid2), dtype=jnp.float32) * 0.1
    w2b = jax.random.normal(k6, (hid2, C2), dtype=jnp.float32) * 0.1
    out2 = se_layer(x2, w1b, w2b, hw_block=128)
    jax.block_until_ready(out2)
    ref2 = se_layer_ref(x2, w1b, w2b)
    assert jnp.allclose(out2, ref2, atol=1e-5, rtol=1e-5), "split path mismatch"

    print("KERNEL_OK")
</pallas_src>

<mosaic_0001>
module attributes {stable_mosaic.version = 11 : i64} {
  func.func @_se_fused_kernel(%arg0: i32, %arg1: memref<2x32x196xf32, #tpu.memory_space<vmem>>, %arg2: memref<32x2xf32, #tpu.memory_space<vmem>>, %arg3: memref<2x32xf32, #tpu.memory_space<vmem>>, %arg4: memref<2x32x196xf32, #tpu.memory_space<vmem>>) attributes {dimension_semantics = [#tpu.dimension_semantics<parallel>], iteration_bounds = array<i64: 2>, scalar_prefetch = 0 : i64, scratch_operands = 0 : i64, tpu.core_type = #tpu.core_type<tc>, window_params = [{transform_indices = @transform_0, window_bounds = array<i64: 2, 32, 196>}, {pipeline_mode = #tpu.pipeline_mode<synchronous>, transform_indices = @transform_1, window_bounds = array<i64: 32, 2>}, {pipeline_mode = #tpu.pipeline_mode<synchronous>, transform_indices = @transform_2, window_bounds = array<i64: 2, 32>}, {transform_indices = @transform_3, window_bounds = array<i64: 2, 32, 196>}]} {
    %c0 = arith.constant 0 : index
    %c0_0 = arith.constant 0 : index
    %c0_1 = arith.constant 0 : index
    %0 = vector.load %arg1[%c0, %c0_0, %c0_1] : memref<2x32x196xf32, #tpu.memory_space<vmem>>, vector<2x32x196xf32>
    %cst = arith.constant dense<0.000000e+00> : vector<2x32xf32>
    %1 = vector.multi_reduction <add>, %0, %cst [2] : vector<2x32x196xf32> to vector<2x32xf32>
    %cst_2 = arith.constant 0.00510204071 : f32
    %2 = vector.broadcast %cst_2 : f32 to vector<2x32xf32>
    %3 = arith.mulf %1, %2 : vector<2x32xf32>
    %c0_3 = arith.constant 0 : index
    %c0_4 = arith.constant 0 : index
    %4 = vector.load %arg2[%c0_3, %c0_4] : memref<32x2xf32, #tpu.memory_space<vmem>>, vector<32x2xf32>
    %cst_5 = arith.constant dense<0.000000e+00> : vector<2x2xf32>
    %5 = tpu.matmul %3, %4, %cst_5 {dimension_numbers = #tpu.dot_dimension_numbers<[1], [0], [0], [1], [0, 0, 1, 1], [], []>} : vector<2x32xf32>, vector<32x2xf32>, vector<2x2xf32> -> vector<2x2xf32>
    %cst_6 = arith.constant 0.000000e+00 : f32
    %6 = vector.broadcast %cst_6 : f32 to vector<2x2xf32>
    %7 = arith.maximumf %5, %6 : vector<2x2xf32>
    %c0_7 = arith.constant 0 : index
    %c0_8 = arith.constant 0 : index
    %8 = vector.load %arg3[%c0_7, %c0_8] : memref<2x32xf32, #tpu.memory_space<vmem>>, vector<2x32xf32>
    %cst_9 = arith.constant dense<0.000000e+00> : vector<2x32xf32>
    %9 = tpu.matmul %7, %8, %cst_9 {dimension_numbers = #tpu.dot_dimension_numbers<[1], [0], [0], [1], [0, 0, 1, 1], [], []>} : vector<2x2xf32>, vector<2x32xf32>, vector<2x32xf32> -> vector<2x32xf32>
    %10 = arith.negf %9 : vector<2x32xf32>
    %11 = math.exp %10 : vector<2x32xf32>
    %cst_10 = arith.constant 1.000000e+00 : f32
    %12 = vector.broadcast %cst_10 : f32 to vector<2x32xf32>
    %13 = arith.addf %12, %11 : vector<2x32xf32>
    %14 = arith.divf %12, %13 : vector<2x32xf32>
    %15 = vector.shape_cast %14 : vector<2x32xf32> to vector<2x32x1xf32>
    %16 = vector.broadcast %15 : vector<2x32x1xf32> to vector<2x32x196xf32>
    %17 = arith.mulf %0, %16 : vector<2x32x196xf32>
    %c0_11 = arith.constant 0 : index
    %c0_12 = arith.constant 0 : index
    %c0_13 = arith.constant 0 : index
    %18 = vector.load %arg4[%c0_11, %c0_12, %c0_13] : memref<2x32x196xf32, #tpu.memory_space<vmem>>, vector<2x32x196xf32>
    tpu.vector_store %arg4[%c0_11, %c0_12, %c0_13], %17 {strides = array<i32>} : memref<2x32x196xf32, #tpu.memory_space<vmem>>, vector<2x32x196xf32>,
    return
  }
  func.func @transform_0(%arg0: i32) -> (i32, i32, i32) {
    %c0_i32 = arith.constant 0 : i32
    %c0_i32_0 = arith.constant 0 : i32
    %c0_i32_1 = arith.constant 0 : i32
    return %arg0, %c0_i32, %c0_i32_0 : i32, i32, i32
  }
  func.func @transform_1(%arg0: i32) -> (i32, i32) {
    %c0_i32 = arith.constant 0 : i32
    %c0_i32_0 = arith.constant 0 : i32
    %c0_i32_1 = arith.constant 0 : i32
    return %c0_i32, %c0_i32_0 : i32, i32
  }
  func.func @transform_2(%arg0: i32) -> (i32, i32) {
    %c0_i32 = arith.constant 0 : i32
    %c0_i32_0 = arith.constant 0 : i32
    %c0_i32_1 = arith.constant 0 : i32
    return %c0_i32, %c0_i32_0 : i32, i32
  }
  func.func @transform_3(%arg0: i32) -> (i32, i32, i32) {
    %c0_i32 = arith.constant 0 : i32
    %c0_i32_0 = arith.constant 0 : i32
    %c0_i32_1 = arith.constant 0 : i32
    return %arg0, %c0_i32, %c0_i32_0 : i32, i32, i32
  }
}

</mosaic_0001>

<llo_original>
// kernel: tpu_custom_call.1
$region0: #{tpu_custom_call.1}
  #allocation0 [shape = 'u32[]', space=smem, size = 0x4, offset = 0x4, fixed_abs, tag = 'smem constant byte address 0x4 - core index']
  #allocation1 [shape = 'u32[144,128]{1,0:T(1,128)}', space=vmem, size = 0x12000, scoped, tag = 'internal scratch']
  %s0 = inlined_call_operand.hbm [shape: f32[4,32,196], index: 0, kind: input, shape index: {}]
  %s1 = inlined_call_operand.vmem [shape: f32[32,2], index: 1, kind: input, shape index: {}]
  %s2 = inlined_call_operand.vmem [shape: f32[2,32], index: 2, kind: input, shape index: {}]
  %s3 = inlined_call_operand.hbm [shape: f32[4,32,196], index: 3, kind: output, shape index: {}]
  %s4 = sld [smem:[#allocation0]]
  $region49: #{tpu_custom_call.1} parent=0
    _
  %s6 = ssub.s32 1, %s4
  %s7 = scalar_select 0, %s6, %s4
  $region1: #{tpu_custom_call.1} parent=0
    #allocation2 [shape = 'u8[131072]{0}', space=vmem, size = 0x20000, scoped, tag = 'input window, operand 0']
    #allocation3 [shape = 's32[2]{0}', space=sflag, size = 0x8, scoped, tag = 'scoped memory for tpu_custom_call.1']
    #allocation4 [shape = 's32[2]{0}', space=sflag, size = 0x8, scoped, tag = 'scoped memory for tpu_custom_call.1']
    #allocation5 [shape = 'u8[131072]{0}', space=vmem, size = 0x20000, scoped, tag = 'output window, operand 0']
    %8 = vsyncpa [#allocation3], 0
    %s9 = scalar_lea.sflag [#allocation3], 1
    %10 = vsyncpa %s9, 0
    %11 = vsyncpa [#allocation4], 0
    %s12 = scalar_lea.sflag [#allocation4], 1
    %13 = vsyncpa %s12, 0
    loop: start=0, step=1, limit=4
    $region2: #{tpu_custom_call.1} parent=1 // loop_pre_header
      _
    $region3: #{tpu_custom_call.1} parent=1 // loop_header
      %s15 = sphi 0, %s19
      %p16 = scmp.ge.s32.totalorder %s15, 4
      %s25 = sphi 0, %s27
      %s28 = sphi 0, %s25
      %s29 = sphi 0, %s28
      %s45 = sphi 0, %s29
      %s49 = sphi 0, %s49
      %s51 = sphi 0, %s49
      %s52 = sphi 0, %s51
      %s66 = sphi 0, %s52
      %s70 = sphi 0, %s70
      %s72 = sphi 0, %s70
      %s73 = sphi 0, %s72
      %s87 = sphi 0, %s73
      %s93 = sphi 0, %s95
      %s96 = sphi 0, %s93
      %s97 = sphi 0, %s96
      %s113 = sphi 0, %s97
    $region4: #{tpu_custom_call.1} parent=1 // loop_header_branch
      %18 = sbr.rel (%p16) target = $region8
    $region5: #{tpu_custom_call.1} parent=1 // loop_body
      %s20 = ssub.s32 %s15, 1
      %s21 = ssub.s32 %s15, 2
      %s22 = sadd.s32 %s15, 1
      %s23 = ssub.s32 %s15, %s22
      %p24 = scmp.eq.s32.totalorder %s23, 0
      %s26 = sadd.s32 %s25, 1
      %s27 = scalar_select %p24, %s25, %s26
      %p30 = pneg %p24
      %p31 = scmp.eq.s32.totalorder %s15, 1
      %p32 = por %p30, %p31
      %p33 = scmp.ne.s32.totalorder %s25, %s28
      %p34 = scmp.eq.s32.totalorder %s15, 0
      %p35 = por %p33, %p34
      %p36 = scmp.ne.s32.totalorder %s25, %s28
      %p37 = scmp.eq.s32.totalorder %s20, 1
      %p38 = por %p36, %p37
      %p39 = scmp.ne.s32.totalorder %s28, %s29
      %p40 = scmp.eq.s32.totalorder %s20, 0
      %p41 = por %p39, %p40
      %p42 = scmp.ne.s32.totalorder %s28, %s29
      %p43 = scmp.eq.s32.totalorder %s21, 1
      %p44 = por %p42, %p43
      %p46 = scmp.ne.s32.totalorder %s29, %s45
      %p47 = scmp.eq.s32.totalorder %s21, 0
      %p48 = por %p46, %p47
      %s50 = sadd.s32 %s49, 1
      %p53 = scmp.eq.s32.totalorder %s15, 1
      %p54 = scmp.ne.s32.totalorder %s49, %s51
      %p55 = scmp.eq.s32.totalorder %s15, 0
      %p56 = por %p54, %p55
      %p57 = scmp.ne.s32.totalorder %s49, %s51
      %p58 = scmp.eq.s32.totalorder %s20, 1
      %p59 = por %p57, %p58
      %p60 = scmp.ne.s32.totalorder %s51, %s52
      %p61 = scmp.eq.s32.totalorder %s20, 0
      %p62 = por %p60, %p61
      %p63 = scmp.ne.s32.totalorder %s51, %s52
      %p64 = scmp.eq.s32.totalorder %s21, 1
      %p65 = por %p63, %p64
      %p67 = scmp.ne.s32.totalorder %s52, %s66
      %p68 = scmp.eq.s32.totalorder %s21, 0
      %p69 = por %p67, %p68
      %s71 = sadd.s32 %s70, 1
      %p74 = scmp.eq.s32.totalorder %s15, 1
      %p75 = scmp.ne.s32.totalorder %s70, %s72
      %p76 = scmp.eq.s32.totalorder %s15, 0
      %p77 = por %p75, %p76
      %p78 = scmp.ne.s32.totalorder %s70, %s72
      %p79 = scmp.eq.s32.totalorder %s20, 1
      %p80 = por %p78, %p79
      %p81 = scmp.ne.s32.totalorder %s72, %s73
      %p82 = scmp.eq.s32.totalorder %s20, 0
      %p83 = por %p81, %p82
      %p84 = scmp.ne.s32.totalorder %s72, %s73
      %p85 = scmp.eq.s32.totalorder %s21, 1
      %p86 = por %p84, %p85
      %p88 = scmp.ne.s32.totalorder %s73, %s87
      %p89 = scmp.eq.s32.totalorder %s21, 0
      %p90 = por %p88, %p89
      %s91 = ssub.s32 %s15, %s22
      %p92 = scmp.eq.s32.totalorder %s91, 0
      %s94 = sadd.s32 %s93, 1
      %s95 = scalar_select %p92, %s93, %s94
      %p98 = pneg %p92
      %p99 = scmp.eq.s32.totalorder %s15, 1
      %p100 = por %p98, %p99
      %p101 = scmp.ne.s32.totalorder %s93, %s96
      %p102 = scmp.eq.s32.totalorder %s15, 0
      %p103 = por %p101, %p102
      %p104 = scmp.ne.s32.totalorder %s93, %s96
      %p105 = scmp.eq.s32.totalorder %s20, 1
      %p106 = por %p104, %p105
      %p107 = scmp.ne.s32.totalorder %s96, %s97
      %p108 = scmp.eq.s32.totalorder %s20, 0
      %p109 = por %p107, %p108
      %p110 = scmp.ne.s32.totalorder %s96, %s97
      %p111 = scmp.eq.s32.totalorder %s21, 1
      %p112 = por %p110, %p111
      %p114 = scmp.ne.s32.totalorder %s97, %s113
      %p115 = scmp.eq.s32.totalorder %s21, 0
      %p116 = por %p114, %p115
      %p117 = scmp.le.s32.totalorder 1, %s15
      %p118 = scmp.lt.s32.totalorder %s15, 3
      %p119 = pnand %p117, %p118
      %p120 = pneg %p119
      // Predicated region
      $region9: #{tpu_custom_call.1} parent=5 // pred_check
        _
      $region10: #{tpu_custom_call.1} parent=5 // pred_check_branch
        %122 = sbr.rel (%p119) target = $region12
      $region11: #{tpu_custom_call.1} parent=5 // pred_region
        %s123 = ssub.s32 %s15, 1
        // Predicated region
        $region13: #{tpu_custom_call.1} parent=11 // pred_check
          %p124 = pneg %p62
        $region14: #{tpu_custom_call.1} parent=11 // pred_check_branch
          %126 = sbr.rel (%p124) target = $region16
        $region15: #{tpu_custom_call.1} parent=11 // pred_region
          _
        $region16: #{tpu_custom_call.1} parent=11 // pred_fallthru
          _
        // Predicated region
        $region17: #{tpu_custom_call.1} parent=11 // pred_check
          %p127 = pneg %p83
        $region18: #{tpu_custom_call.1} parent=11 // pred_check_branch
          %129 = sbr.rel (%p127) target = $region20
        $region19: #{tpu_custom_call.1} parent=11 // pred_region
          _
        $region20: #{tpu_custom_call.1} parent=11 // pred_fallthru
          _
      $region12: #{tpu_custom_call.1} parent=5 // pred_fallthru
        _
      %p130 = scmp.lt.s32.totalorder %s15, 2
      // Predicated region
      $region21: #{tpu_custom_call.1} parent=5 // pred_check
        %p131 = pneg %p130
      $region22: #{tpu_custom_call.1} parent=5 // pred_check_branch
        %133 = sbr.rel (%p131) target = $region24
      $region23: #{tpu_custom_call.1} parent=5 // pred_region
        // Predicated region
        $region25: #{tpu_custom_call.1} parent=23 // pred_check
          %p134 = pneg %p35
        $region26: #{tpu_custom_call.1} parent=23 // pred_check_branch
          %136 = sbr.rel (%p134) target = $region28
        $region27: #{tpu_custom_call.1} parent=23 // pred_region
          %s137 = sand.u32 %s25, 1
          %s138 = scalar_lea.sflag [#allocation3], %s137
          %s139 = sand.u32 %s25, 1
          %s140 = smul.addr %s139, 128
          %s141 = scalar_lea.vmem [#allocation2], %s140
          %s142 = smul.u32 2, %s15
          %s144 = ssub.s32 2048, 2048
          %145 = vsyncadd %s138, %s144
          %s146 = smul.addr %s142, 8
          %s147 = smul.addr %s146, 128
          %s148 = scalar_lea.hbm %s0, %s147
          %s149 = sshll.u32 %s141, 4
          %s150 = int_to_ptr.vmem [resolvable:$true] %s149
          %155 = dma.hbm_to_vmem [thread:$0]  %s148, 2048, %s150, %s138, 256, 256, 16
        $region28: #{tpu_custom_call.1} parent=23 // pred_fallthru
          _
      $region24: #{tpu_custom_call.1} parent=5 // pred_fallthru
        _
      %p156 = scmp.le.s32.totalorder 1, %s15
      %p157 = scmp.lt.s32.totalorder %s15, 3
      %p158 = pnand %p156, %p157
      %p159 = pneg %p158
      // Predicated region
      $region29: #{tpu_custom_call.1} parent=5 // pred_check
        _
      $region30: #{tpu_custom_call.1} parent=5 // pred_check_branch
        %161 = sbr.rel (%p158) target = $region32
      $region31: #{tpu_custom_call.1} parent=5 // pred_region
        %s162 = ssub.s32 %s15, 1
        %s163 = sand.u32 %s28, 1
        %s164 = scalar_lea.sflag [#allocation3], %s163
        %s165 = sand.u32 %s28, 1
        %s166 = smul.addr %s165, 128
        %s167 = scalar_lea.vmem [#allocation2], %s166
        // Predicated region
        $region33: #{tpu_custom_call.1} parent=31 // pred_check
          %p168 = pneg %p41
        $region34: #{tpu_custom_call.1} parent=31 // pred_check_branch
          %170 = sbr.rel (%p168) target = $region36
        $region35: #{tpu_custom_call.1} parent=31 // pred_region
          %171 = dma.done %s164, 2048
        $region36: #{tpu_custom_call.1} parent=31 // pred_fallthru
          _
        %s172 = sand.u32 %s28, 1
        %s173 = scalar_lea.sflag [#allocation3], %s172
        %s174 = sand.u32 %s28, 1
        %s175 = smul.addr %s174, 128
        %s176 = scalar_lea.vmem [#allocation2], %s175
        %p177 = pneg %p41
        %p178 = pneg %p38
        %p179 = pneg %p62
        %p180 = pneg %p59
        %p181 = pneg %p83
        %p182 = pneg %p80
        %p183 = pneg %p109
        %p184 = pneg %p106
        %s185 = sand.u32 %s96, 1
        %s186 = scalar_lea.sflag [#allocation4], %s185
        %s187 = sand.u32 %s96, 1
        %s188 = smul.addr %s187, 128
        %s189 = scalar_lea.vmem [#allocation5], %s188
        %s190 = smul.u32 2, %s20
        %s191 = smul.u32 2, %s20
        %v192 = vld [vmem:[%s167] sm:$0xff]
        %v193 = vld [vmem:[%s167 + $0x8] sm:$0xff]
        %v194 = vld [vmem:[%s167 + $0x10] sm:$0xff]
        %v195 = vld [vmem:[%s167 + $0x18] sm:$0xff]
        %v196 = vld [vmem:[%s167 + $0x20] sm:$0xff]
        %v197 = vld [vmem:[%s167 + $0x28] sm:$0xff]
        %v198 = vld [vmem:[%s167 + $0x30] sm:$0xff]
        %v199 = vld [vmem:[%s167 + $0x38] sm:$0xff]
        %v200 = vld [vmem:[%s167 + $0x40] sm:$0xff]
        %v201 = vld [vmem:[%s167 + $0x48] sm:$0xff]
        %v202 = vld [vmem:[%s167 + $0x50] sm:$0xff]
        %v203 = vld [vmem:[%s167 + $0x58] sm:$0xff]
        %v204 = vld [vmem:[%s167 + $0x60] sm:$0xff]
        %v205 = vld [vmem:[%s167 + $0x68] sm:$0xff]
        %v206 = vld [vmem:[%s167 + $0x70] sm:$0xff]
        %v207 = vld [vmem:[%s167 + $0x78] sm:$0xff]
        %vm208 = vcmask 556032
        %v209 = vsel %vm208, %v193, 0.0
        %v210 = vadd.f32 %v192, %v209
        %211 = vadd.xlane.f32.xlu0 %v210
        %v212 = vpop.xlane.xlu0 %211
        %v213 = vsel %vm208, %v195, 0.0
        %v214 = vadd.f32 %v194, %v213
        %215 = vadd.xlane.f32.xlu0 %v214
        %v216 = vpop.xlane.xlu0 %215
        %v217 = vsel %vm208, %v197, 0.0
        %v218 = vadd.f32 %v196, %v217
        %219 = vadd.xlane.f32.xlu0 %v218
        %v220 = vpop.xlane.xlu0 %219
        %v221 = vsel %vm208, %v199, 0.0
        %v222 = vadd.f32 %v198, %v221
        %223 = vadd.xlane.f32.xlu0 %v222
        %v224 = vpop.xlane.xlu0 %223
        %v225 = vsel %vm208, %v201, 0.0
        %v226 = vadd.f32 %v200, %v225
        %227 = vadd.xlane.f32.xlu0 %v226
        %v228 = vpop.xlane.xlu0 %227
        %v229 = vsel %vm208, %v203, 0.0
        %v230 = vadd.f32 %v202, %v229
        %231 = vadd.xlane.f32.xlu0 %v230
        %v232 = vpop.xlane.xlu0 %231
        %v233 = vsel %vm208, %v205, 0.0
        %v234 = vadd.f32 %v204, %v233
        %235 = vadd.xlane.f32.xlu0 %v234
        %v236 = vpop.xlane.xlu0 %235
        %v237 = vsel %vm208, %v207, 0.0
        %v238 = vadd.f32 %v206, %v237
        %239 = vadd.xlane.f32.xlu0 %v238
        %v240 = vpop.xlane.xlu0 %239
        %v241 = vmul.f32 %v212, 0.0051020407
        %v242 = vmul.f32 %v216, 0.0051020407
        %v243 = vmul.f32 %v220, 0.0051020407
        %v244 = vmul.f32 %v224, 0.0051020407
        %v245 = vmul.f32 %v228, 0.0051020407
        %v246 = vmul.f32 %v232, 0.0051020407
        %v247 = vmul.f32 %v236, 0.0051020407
        %v248 = vmul.f32 %v240, 0.0051020407
        %v249 = vld [vmem:[%s1] sm:$0xff]
        %v250 = vld [vmem:[%s1 + $0x8] sm:$0xff]
        %v251 = vld [vmem:[%s1 + $0x10] sm:$0xff]
        %v252 = vld [vmem:[%s1 + $0x18] sm:$0xff]
        %v261 = vlaneseq
        %v262 = vand.u32 %v261, 127
        %v263 = vlaneseq
        %v264 = vshrl.u32 %v263, 7
        %v265 = vsub.s32 %v262, %v264
        %v266 = vrot.slane %v241, %v265
        %v267 = vadd.s32 %v262, 4294967288
        %v268 = vlaneseq
        %v269 = vshrl.u32 %v268, 7
        %v270 = vsub.s32 %v267, %v269
        %v271 = vrot.slane %v242, %v270
        %vm272 = vcmask 130112
        %v273 = vsel %vm272, %v271, %v266
        %v274 = vadd.s32 %v262, 4294967280
        %v275 = vlaneseq
        %v276 = vshrl.u32 %v275, 7
        %v277 = vsub.s32 %v274, %v276
        %v278 = vrot.slane %v243, %v277
        %vm279 = vcmask 195712
        %v280 = vsel %vm279, %v278, %v273
        %v281 = vadd.s32 %v262, 4294967272
        %v282 = vlaneseq
        %v283 = vshrl.u32 %v282, 7
        %v284 = vsub.s32 %v281, %v283
        %v285 = vrot.slane %v244, %v284
        %vm286 = vcmask 261312
        %v287 = vsel %vm286, %v285, %v280
        %v288 = vlaneseq
        %v289 = vshrl.u32 %v288, 7
        %v290 = vsub.s32 %v262, %v289
        %v291 = vrot.slane %v245, %v290
        %v292 = vlaneseq
        %v293 = vshrl.u32 %v292, 7
        %v294 = vsub.s32 %v267, %v293
        %v295 = vrot.slane %v246, %v294
        %v296 = vsel %vm272, %v295, %v291
        %v297 = vlaneseq
        %v298 = vshrl.u32 %v297, 7
        %v299 = vsub.s32 %v274, %v298
        %v300 = vrot.slane %v247, %v299
        %v301 = vsel %vm279, %v300, %v296
        %v302 = vlaneseq
        %v303 = vshrl.u32 %v302, 7
        %v304 = vsub.s32 %v281, %v303
        %v305 = vrot.slane %v248, %v304
        %v306 = vsel %vm286, %v305, %v301
        %vm307 = vcmask 1041409
        %v308 = vsel %vm307, %v306, %v287
        %vm309 = vcmask 261120
        %v310 = vsel %vm309, %v308, 0
        %312 = vmatprep.subr.mxu0 0.0
        %313 = vmatpush1.msra.mxu0 %v249
        %314 = vmatprep.subr.mxu0 0.0
        %315 = vmatpush1.msra.mxu0 %v250
        %316 = vmatprep.subr.mxu0 0.0
        %317 = vmatpush1.msra.mxu0 %v251
        %318 = vmatprep.subr.mxu0 0.0
        %319 = vmatpush1.msra.mxu0 %v252
        %320 = vmatprep.subr.mxu0 0.0
        %321 = vmatpush1.msra.mxu0 0.0
        %322 = vmatprep.subr.mxu0 0.0
        %323 = vmatpush1.msra.mxu0 0.0
        %324 = vmatprep.subr.mxu0 0.0
        %325 = vmatpush1.msra.mxu0 0.0
        %326 = vmatprep.subr.mxu0 0.0
        %327 = vmatpush1.msra.mxu0 0.0
        %328 = vmatprep.subr.mxu0 0.0
        %329 = vmatpush1.msra.mxu0 0.0
        %330 = vmatprep.subr.mxu0 0.0
        %331 = vmatpush1.msra.mxu0 0.0
        %332 = vmatprep.subr.mxu0 0.0
        %333 = vmatpush1.msra.mxu0 0.0
        %334 = vmatprep.subr.mxu0 0.0
        %335 = vmatpush1.msra.mxu0 0.0
        %336 = vmatprep.subr.mxu0 0.0
        %337 = vmatpush1.msra.mxu0 0.0
        %338 = vmatprep.subr.mxu0 0.0
        %339 = vmatpush1.msra.mxu0 0.0
        %340 = vmatprep.subr.mxu0 0.0
        %341 = vmatpush1.msra.mxu0 0.0
        %342 = vmatprep.subr.mxu0 0.0
        %343 = vmatpush1.msra.mxu0 0.0
        %344 = vmatprep.subr.mxu0 0.0
        %345 = vmatpush1.msra.mxu0 0.0
        %346 = vmatprep.subr.mxu0 0.0
        %347 = vmatpush1.msra.mxu0 0.0
        %348 = vmatprep.subr.mxu0 0.0
        %349 = vmatpush1.msra.mxu0 0.0
        %350 = vmatprep.subr.mxu0 0.0
        %351 = vmatpush1.msra.mxu0 0.0
        %352 = vmatprep.subr.mxu0 0.0
        %353 = vmatpush1.msra.mxu0 0.0
        %354 = vmatprep.subr.mxu0 0.0
        %355 = vmatpush1.msra.mxu0 0.0
        %356 = vmatprep.subr.mxu0 0.0
        %357 = vmatpush1.msra.mxu0 0.0
        %358 = vmatprep.subr.mxu0 0.0
        %359 = vmatpush1.msra.mxu0 0.0
        %360 = vmatprep.subr.mxu0 0.0
        %361 = vmatpush1.msra.mxu0 0.0
        %362 = vmatprep.subr.mxu0 0.0
        %363 = vmatpush1.msra.mxu0 0.0
        %364 = vmatprep.subr.mxu0 0.0
        %365 = vmatpush1.msra.mxu0 0.0
        %366 = vmatprep.subr.mxu0 0.0
        %367 = vmatpush1.msra.mxu0 0.0
        %368 = vmatprep.subr.mxu0 0.0
        %369 = vmatpush1.msra.mxu0 0.0
        %370 = vmatprep.subr.mxu0 0.0
        %371 = vmatpush1.msra.mxu0 0.0
        %372 = vmatprep.subr.mxu0 0.0
        %373 = vmatpush1.msra.mxu0 0.0
        %374 = vmatprep.subr.mxu0 0.0
        %375 = vmatpush1.msra.mxu0 0.0
        %376 = vmatprep.mubr.f32.mxu0 0.0
        %377 = vmatmul.mubr.f32.gmra.mrb[0].mxu0 %v310
        %v378 = vpop.f32.mrb[0].mxu0
        %v379 = vadd.f32 0.0, %v378
        %v380 = vpop.f32.mrb[0].mxu0
        %381 = vdwg.mxu0
        %v382 = vmax.f32 %v379, 0.0
        %v383 = vld [vmem:[%s2] sm:$0x3]
        %vm384 = vcmask 15360
        %v386 = vsel %vm384, %v382, 0
        %vm388 = vcmask 1041408
        %v390 = vsel %vm388, %v383, 0
        %392 = vmatprep.subr.mxu0 0.0
        %393 = vmatpush1.msra.mxu0 %v390
        %394 = vmatprep.subr.mxu0 0.0
        %395 = vmatpush1.msra.mxu0 0.0
        %396 = vmatprep.subr.mxu0 0.0
        %397 = vmatpush1.msra.mxu0 0.0
        %398 = vmatprep.subr.mxu0 0.0
        %399 = vmatpush1.msra.mxu0 0.0
        %400 = vmatprep.subr.mxu0 0.0
        %401 = vmatpush1.msra.mxu0 0.0
        %402 = vmatprep.subr.mxu0 0.0
        %403 = vmatpush1.msra.mxu0 0.0
        %404 = vmatprep.subr.mxu0 0.0
        %405 = vmatpush1.msra.mxu0 0.0
        %406 = vmatprep.subr.mxu0 0.0
        %407 = vmatpush1.msra.mxu0 0.0
        %408 = vmatprep.subr.mxu0 0.0
        %409 = vmatpush1.msra.mxu0 0.0
        %410 = vmatprep.subr.mxu0 0.0
        %411 = vmatpush1.msra.mxu0 0.0
        %412 = vmatprep.subr.mxu0 0.0
        %413 = vmatpush1.msra.mxu0 0.0
        %414 = vmatprep.subr.mxu0 0.0
        %415 = vmatpush1.msra.mxu0 0.0
        %416 = vmatprep.subr.mxu0 0.0
        %417 = vmatpush1.msra.mxu0 0.0
        %418 = vmatprep.subr.mxu0 0.0
        %419 = vmatpush1.msra.mxu0 0.0
        %420 = vmatprep.subr.mxu0 0.0
        %421 = vmatpush1.msra.mxu0 0.0
        %422 = vmatprep.subr.mxu0 0.0
        %423 = vmatpush1.msra.mxu0 0.0
        %424 = vmatprep.subr.mxu0 0.0
        %425 = vmatpush1.msra.mxu0 0.0
        %426 = vmatprep.subr.mxu0 0.0
        %427 = vmatpush1.msra.mxu0 0.0
        %428 = vmatprep.subr.mxu0 0.0
        %429 = vmatpush1.msra.mxu0 0.0
        %430 = vmatprep.subr.mxu0 0.0
        %431 = vmatpush1.msra.mxu0 0.0
        %432 = vmatprep.subr.mxu0 0.0
        %433 = vmatpush1.msra.mxu0 0.0
        %434 = vmatprep.subr.mxu0 0.0
        %435 = vmatpush1.msra.mxu0 0.0
        %436 = vmatprep.subr.mxu0 0.0
        %437 = vmatpush1.msra.mxu0 0.0
        %438 = vmatprep.subr.mxu0 0.0
        %439 = vmatpush1.msra.mxu0 0.0
        %440 = vmatprep.subr.mxu0 0.0
        %441 = vmatpush1.msra.mxu0 0.0
        %442 = vmatprep.subr.mxu0 0.0
        %443 = vmatpush1.msra.mxu0 0.0
        %444 = vmatprep.subr.mxu0 0.0
        %445 = vmatpush1.msra.mxu0 0.0
        %446 = vmatprep.subr.mxu0 0.0
        %447 = vmatpush1.msra.mxu0 0.0
        %448 = vmatprep.subr.mxu0 0.0
        %449 = vmatpush1.msra.mxu0 0.0
        %450 = vmatprep.subr.mxu0 0.0
        %451 = vmatpush1.msra.mxu0 0.0
        %452 = vmatprep.subr.mxu0 0.0
        %453 = vmatpush1.msra.mxu0 0.0
        %454 = vmatprep.subr.mxu0 0.0
        %455 = vmatpush1.msra.mxu0 0.0
        %456 = vmatprep.mubr.f32.mxu0 0.0
        %457 = vmatmul.mubr.f32.gmra.mrb[0].mxu0 %v386
        %v458 = vpop.f32.mrb[0].mxu0
        %v459 = vadd.f32 0.0, %v458
        %v460 = vpop.f32.mrb[0].mxu0
        %461 = vdwg.mxu0
        %v462 = vxor.u32 %v459, 2147483648
        %v463 = vmul.f32 %v462, 1.442695
        %v464 = vpow.pop %v463
        %v465 = vadd.f32 %v464, 1.0
        %v466 = vrcp.pop %v465
        %v467 = vmul.f32 1.0, %v466
        %v468 = vlaneseq
        %v469 = vshrl.u32 %v468, 7
        %v470 = vsub.s32 0, %v469
        %v471 = vrot.slane %v467, %v470
        %473 = vbcast.lane.b32.xlu0 %v471, 256
        %v474 = vpop.permute.xlu0 %473
        %s476 = sor.u32 256, 8
        %477 = vbcast.lane.b32.xlu0 %v471, %s476
        %v478 = vpop.permute.xlu0 %477
        %s480 = sor.u32 256, 16
        %481 = vbcast.lane.b32.xlu0 %v471, %s480
        %v482 = vpop.permute.xlu0 %481
        %s484 = sor.u32 256, 24
        %485 = vbcast.lane.b32.xlu0 %v471, %s484
        %v486 = vpop.permute.xlu0 %485
        %v487 = vlaneseq
        %v488 = vshrl.u32 %v487, 7
        %v489 = vsub.s32 1, %v488
        %v490 = vrot.slane %v467, %v489
        %492 = vbcast.lane.b32.xlu0 %v490, 256
        %v493 = vpop.permute.xlu0 %492
        %s495 = sor.u32 256, 8
        %496 = vbcast.lane.b32.xlu0 %v490, %s495
        %v497 = vpop.permute.xlu0 %496
        %s499 = sor.u32 256, 16
        %500 = vbcast.lane.b32.xlu0 %v490, %s499
        %v501 = vpop.permute.xlu0 %500
        %s503 = sor.u32 256, 24
        %504 = vbcast.lane.b32.xlu0 %v490, %s503
        %v505 = vpop.permute.xlu0 %504
        %v506 = vmul.f32 %v192, %v474
        %v507 = vmul.f32 %v193, %v474
        %v508 = vmul.f32 %v194, %v478
        %v509 = vmul.f32 %v195, %v478
        %v510 = vmul.f32 %v196, %v482
        %v511 = vmul.f32 %v197, %v482
        %v512 = vmul.f32 %v198, %v486
        %v513 = vmul.f32 %v199, %v486
        %v514 = vmul.f32 %v200, %v493
        %v515 = vmul.f32 %v201, %v493
        %v516 = vmul.f32 %v202, %v497
        %v517 = vmul.f32 %v203, %v497
        %v518 = vmul.f32 %v204, %v501
        %v519 = vmul.f32 %v205, %v501
        %v520 = vmul.f32 %v206, %v505
        %v521 = vmul.f32 %v207, %v505
        %522 = vst [vmem:[%s189] sm:$0xff] %v506
        %523 = vst.msk [vmem:[%s189 + $0x8] sm:$0xff] %vm208, %v507
        %524 = vst [vmem:[%s189 + $0x10] sm:$0xff] %v508
        %525 = vst.msk [vmem:[%s189 + $0x18] sm:$0xff] %vm208, %v509
        %526 = vst [vmem:[%s189 + $0x20] sm:$0xff] %v510
        %527 = vst.msk [vmem:[%s189 + $0x28] sm:$0xff] %vm208, %v511
        %528 = vst [vmem:[%s189 + $0x30] sm:$0xff] %v512
        %529 = vst.msk [vmem:[%s189 + $0x38] sm:$0xff] %vm208, %v513
        %530 = vst [vmem:[%s189 + $0x40] sm:$0xff] %v514
        %531 = vst.msk [vmem:[%s189 + $0x48] sm:$0xff] %vm208, %v515
        %532 = vst [vmem:[%s189 + $0x50] sm:$0xff] %v516
        %533 = vst.msk [vmem:[%s189 + $0x58] sm:$0xff] %vm208, %v517
        %534 = vst [vmem:[%s189 + $0x60] sm:$0xff] %v518
        %535 = vst.msk [vmem:[%s189 + $0x68] sm:$0xff] %vm208, %v519
        %536 = vst [vmem:[%s189 + $0x70] sm:$0xff] %v520
        %537 = vst.msk [vmem:[%s189 + $0x78] sm:$0xff] %vm208, %v521
        %s538 = sand.u32 %s96, 1
        %s539 = scalar_lea.sflag [#allocation4], %s538
        %s540 = sand.u32 %s96, 1
        %s541 = smul.addr %s540, 128
        %s542 = scalar_lea.vmem [#allocation5], %s541
        // Predicated region
        $region37: #{tpu_custom_call.1} parent=31 // pred_check
          %p543 = pneg %p106
        $region38: #{tpu_custom_call.1} parent=31 // pred_check_branch
          %545 = sbr.rel (%p543) target = $region40
        $region39: #{tpu_custom_call.1} parent=31 // pred_region
          %s546 = smul.u32 2, %s20
          %s548 = ssub.s32 2048, 2048
          %549 = vsyncadd %s539, %s548
          %s550 = smul.addr %s546, 8
          %s551 = smul.addr %s550, 128
          %s552 = scalar_lea.hbm %s3, %s551
          %s553 = sshll.u32 %s542, 4
          %s554 = int_to_ptr.vmem [resolvable:$true] %s553
          %559 = dma.vmem_to_hbm [thread:$0]  %s554, 2048, %s552, %s539, 256, 256, 16
        $region40: #{tpu_custom_call.1} parent=31 // pred_fallthru
          _
      $region32: #{tpu_custom_call.1} parent=5 // pred_fallthru
        _
      %p560 = scmp.le.s32.totalorder 2, %s15
      // Predicated region
      $region41: #{tpu_custom_call.1} parent=5 // pred_check
        %p561 = pneg %p560
      $region42: #{tpu_custom_call.1} parent=5 // pred_check_branch
        %563 = sbr.rel (%p561) target = $region44
      $region43: #{tpu_custom_call.1} parent=5 // pred_region
        %s564 = ssub.s32 %s15, 2
        // Predicated region
        $region45: #{tpu_custom_call.1} parent=43 // pred_check
          %p565 = pneg %p112
        $region46: #{tpu_custom_call.1} parent=43 // pred_check_branch
          %567 = sbr.rel (%p565) target = $region48
        $region47: #{tpu_custom_call.1} parent=43 // pred_region
          %s568 = sand.u32 %s97, 1
          %s569 = scalar_lea.sflag [#allocation4], %s568
          %s570 = sand.u32 %s97, 1
          %s571 = smul.addr %s570, 128
          %s572 = scalar_lea.vmem [#allocation5], %s571
          %573 = dma.done %s569, 2048
        $region48: #{tpu_custom_call.1} parent=43 // pred_fallthru
          _
      $region44: #{tpu_custom_call.1} parent=5 // pred_fallthru
        _
    $region6: #{tpu_custom_call.1} parent=1 // loop_footer
      %s19 = sadd.s32 1, %s15
    $region7: #{tpu_custom_call.1} parent=1 // loop_footer_branch
      %14 = sbr.rel target = $region3
    $region8: #{tpu_custom_call.1} parent=1 // loop_exit
      _
    %574 = vsyncpa [#allocation3], 1
    %s575 = scalar_lea.sflag [#allocation3], 1
    %576 = vsyncpa %s575, 1
    %577 = vsyncpa [#allocation4], 1
    %s578 = scalar_lea.sflag [#allocation4], 1
    %579 = vsyncpa %s578, 1

</llo_original>
